<compile_context>
chip_gen: v6e
topology: v6e:2x2x1
jax: 0.10.0
libtpu: 0.0.40
codegen_flags: <defaults>
</compile_context>

<pallas_src>
import functools

import jax
import jax.numpy as jnp
from jax.experimental import pallas as pl
from jax.experimental.pallas import tpu as pltpu

_LANE = 128
_UNROLL_CHUNKS = 32            # python-unroll the chunk loop up to this length
_REG_ROWS = 128                # cap bb*C so register accumulators stay in vregs
_DEFAULT_VMEM_CAP = 64 * 1024 * 1024   # conservative fallback (v7x)


def _vmem_capacity_bytes():
    try:
        info = pltpu.get_tpu_info()
        cap = getattr(info, "vmem_capacity_bytes", None)
        if cap:
            return int(cap)
    except Exception:
        pass
    return _DEFAULT_VMEM_CAP


def _chunk_start(i):
    start = i * _LANE
    if not isinstance(start, int):
        start = pl.multiple_of(start, _LANE)
    return start


def _running_sum_max(load_chunk, n_full):
    """Register accumulation of `n_full` equally-shaped f32 chunks (no VMEM RMW)."""
    first = load_chunk(0)
    if n_full <= _UNROLL_CHUNKS:
        s, m = first, first
        for i in range(1, n_full):
            c = load_chunk(i)
            s = s + c
            m = jnp.maximum(m, c)
        return s, m

    def body(i, carry):
        s, m = carry
        c = load_chunk(i)
        return s + c, jnp.maximum(m, c)

    return jax.lax.fori_loop(1, n_full, body, (first, first))


def _finalize_one(sum_col, max_col, w1_ref, w2_ref, hw):
    """Shared MLP gate for ONE batch element.

    sum_col, max_col: (C, 1) f32 pooled columns.  Returns (1, C) f32 gate,
    lane-dense in C.  Both pooled vectors go through the shared MLP in a single
    pair of matmuls (pooled packed as the N=2 operand).
    """
    pooled = jnp.concatenate([sum_col * (1.0 / hw), max_col], axis=-1)   # (C, 2)
    w1 = w1_ref[...]                                                     # (mid, C)
    w2 = w2_ref[...]                                                     # (C, mid)
    h = jnp.dot(w1, pooled.astype(w1.dtype),
                preferred_element_type=jnp.float32)                      # (mid, 2)
    h = jnp.maximum(h, 0.0)
    # Contract mid of h (axis 0) with mid of w2 (axis 1) -> (2, C): lane-dense.
    o_t = jax.lax.dot_general(h.astype(w2.dtype), w2,
                              (((0,), (1,)), ((), ())),
                              preferred_element_type=jnp.float32)        # (2, C)
    return jax.nn.sigmoid(o_t[0:1, :] + o_t[1:2, :])                     # (1, C)


def _ca_kernel_fused(x_ref, w1_ref, w2_ref, o_ref, *, hw, n_full, rem, bb):
    """Single-step path: whole spatial reduction (and bb batch elems) per step.

    x_ref: (bb, C, HW), o_ref: (bb, 1, C).  No scratch accumulators needed.
    """
    def load_chunk(i):
        return x_ref[:, :, pl.ds(_chunk_start(i), _LANE)].astype(jnp.float32)

    s = m = None
    if n_full > 0:
        s, m = _running_sum_max(load_chunk, n_full)        # (bb, C, 128) f32
    tail = None
    if rem > 0:
        tail = x_ref[:, :, pl.ds(n_full * _LANE, rem)].astype(jnp.float32)

    for r in range(bb):
        sum_col = max_col = None
        if s is not None:
            sum_col = jnp.sum(s[r], axis=-1, keepdims=True)            # (C, 1)
            max_col = jnp.max(m[r], axis=-1, keepdims=True)            # (C, 1)
        if tail is not None:
            t_sum = jnp.sum(tail[r], axis=-1, keepdims=True)
            t_max = jnp.max(tail[r], axis=-1, keepdims=True)
            sum_col = t_sum if sum_col is None else sum_col + t_sum
            max_col = t_max if max_col is None else jnp.maximum(max_col, t_max)
        gate = _finalize_one(sum_col, max_col, w1_ref, w2_ref, hw)      # (1, C)
        o_ref[r] = gate.astype(o_ref.dtype)


def _ca_kernel_tiled(x_ref, w1_ref, w2_ref, o_ref, sum_acc, max_acc, *,
                     hw, n_chunks, n_full_last, rem_last):
    """Multi-step path: spatial axis tiled across the last grid dimension.

    x_ref: (1, C, t_hw), o_ref: (1, 1, C), scratch sum/max: (C, 128) f32.
    """
    k = pl.program_id(1)
    nk = pl.num_programs(1)

    @pl.when(k == 0)
    def _init():
        sum_acc[...] = jnp.zeros_like(sum_acc)
        max_acc[...] = jnp.full_like(max_acc, -jnp.inf)

    def load_chunk(i):
        return x_ref[0, :, pl.ds(_chunk_start(i), _LANE)].astype(jnp.float32)

    def accumulate(n):
        # register accumulation; exactly one VMEM RMW of each accumulator.
        s, m = _running_sum_max(load_chunk, n)
        sum_acc[...] += s
        max_acc[...] = jnp.maximum(max_acc[...], m)

    def finalize(extra_sum=None, extra_max=None):
        sum_col = jnp.sum(sum_acc[...], axis=-1, keepdims=True)        # (C, 1)
        max_col = jnp.max(max_acc[...], axis=-1, keepdims=True)        # (C, 1)
        if extra_sum is not None:
            sum_col = sum_col + extra_sum
            max_col = jnp.maximum(max_col, extra_max)
        gate = _finalize_one(sum_col, max_col, w1_ref, w2_ref, hw)     # (1, C)
        o_ref[0] = gate.astype(o_ref.dtype)

    full_last = (n_full_last == n_chunks) and (rem_last == 0)
    if full_last:
        # HW divides evenly into tiles: single uniform, mask-free path.
        accumulate(n_chunks)

        @pl.when(k == nk - 1)
        def _done():
            finalize()
    else:
        # Hot path (all but last step) is mask-free; the statically-known
        # partial tail is handled once on the last step.
        @pl.when(k < nk - 1)
        def _body():
            accumulate(n_chunks)

        @pl.when(k == nk - 1)
        def _last():
            if n_full_last > 0:
                accumulate(n_full_last)
            if rem_last > 0:
                tail = x_ref[0, :, pl.ds(n_full_last * _LANE, rem_last)]
                tail = tail.astype(jnp.float32)                        # (C, rem)
                t_sum = jnp.sum(tail, axis=-1, keepdims=True)          # (C, 1)
                t_max = jnp.max(tail, axis=-1, keepdims=True)          # (C, 1)
                finalize(t_sum, t_max)
            else:
                finalize()


def channel_attention(x, w1, w2, *, buffer_budget_bytes=None):
    """x: (B, C, H, W) NCHW; w1: (mid, C); w2: (C, mid). Returns (B, C, 1, 1)."""
    B, C, H, W = x.shape
    mid = w1.shape[0]
    HW = H * W
    x_flat = x.reshape(B, C, HW)
    itemsize = jnp.dtype(x.dtype).itemsize

    vmem_cap = _vmem_capacity_bytes()
    if buffer_budget_bytes is None:
        # ~1/16 of physical VMEM per pipelined x buffer: 4 MiB on v7x (64 MiB),
        # 8 MiB on v5e/v6e (128 MiB).  Double-buffering stays well inside.
        buffer_budget_bytes = vmem_cap // 16
    vmem_limit = min(vmem_cap // 2, 96 * 1024 * 1024)

    bytes_per_elem = C * HW * itemsize
    out_shape = jax.ShapeDtypeStruct((B, 1, C), x.dtype)

    if bytes_per_elem <= buffer_budget_bytes or HW <= _LANE:
        # ---- Fused single-step path (small feature maps / CBAM common case).
        bb_budget = max(1, buffer_budget_bytes // max(1, bytes_per_elem))
        bb_max = min(B, bb_budget, max(1, _REG_ROWS // C))
        bb = 1
        for cand in range(bb_max, 0, -1):
            if B % cand == 0:
                bb = cand
                break
        n_full, rem = HW // _LANE, HW % _LANE
        kernel = functools.partial(_ca_kernel_fused, hw=HW,
                                   n_full=n_full, rem=rem, bb=bb)
        out = pl.pallas_call(
            kernel,
            out_shape=out_shape,
            grid_spec=pltpu.PrefetchScalarGridSpec(
                num_scalar_prefetch=0,
                grid=(B // bb,),
                in_specs=[
                    pl.BlockSpec((bb, C, HW), lambda b: (b, 0, 0)),
                    pl.BlockSpec((mid, C), lambda b: (0, 0)),
                    pl.BlockSpec((C, mid), lambda b: (0, 0)),
                ],
                out_specs=pl.BlockSpec((bb, 1, C), lambda b: (b, 0, 0)),
            ),
            compiler_params=pltpu.CompilerParams(
                dimension_semantics=("parallel",),
                vmem_limit_bytes=vmem_limit),
        )(x_flat, w1, w2)
    else:
        # ---- Tiled path: spatial reduction across the last grid axis.
        hw_floor = (HW // _LANE) * _LANE
        budget_lanes = (buffer_budget_bytes // (C * itemsize)) // _LANE * _LANE
        t_hw = max(_LANE, min(hw_floor, budget_lanes))
        grid_k = pl.cdiv(HW, t_hw)
        valid_last = HW - (grid_k - 1) * t_hw
        kernel = functools.partial(
            _ca_kernel_tiled, hw=HW, n_chunks=t_hw // _LANE,
            n_full_last=valid_last // _LANE, rem_last=valid_last % _LANE)
        out = pl.pallas_call(
            kernel,
            out_shape=out_shape,
            grid_spec=pltpu.PrefetchScalarGridSpec(
                num_scalar_prefetch=0,
                grid=(B, grid_k),
                in_specs=[
                    pl.BlockSpec((1, C, t_hw), lambda b, k: (b, 0, k)),
                    pl.BlockSpec((mid, C), lambda b, k: (0, 0)),
                    pl.BlockSpec((C, mid), lambda b, k: (0, 0)),
                ],
                out_specs=pl.BlockSpec((1, 1, C), lambda b, k: (b, 0, 0)),
                scratch_shapes=[
                    pltpu.VMEM((C, _LANE), jnp.float32),   # running sum
                    pltpu.VMEM((C, _LANE), jnp.float32),   # running max (f32)
                ],
            ),
            compiler_params=pltpu.CompilerParams(
                dimension_semantics=("parallel", "arbitrary"),
                vmem_limit_bytes=vmem_limit),
        )(x_flat, w1, w2)

    return out.reshape(B, C, 1, 1)


def _reference(x, w1, w2):
    # Pure-JAX reference matching the PyTorch forward exactly.
    avg = jnp.mean(x, axis=(2, 3))                       # (B, C)
    mx = jnp.max(x, axis=(2, 3))                         # (B, C)

    def fc(v):
        h = jnp.maximum(v @ w1.T, 0.0)                   # (B, mid)
        return h @ w2.T                                  # (B, C)

    out = jax.nn.sigmoid(fc(avg) + fc(mx))               # (B, C)
    return out[:, :, None, None]


def _make_inputs(key, B, C, H, W, ratio):
    mid = max(1, C // ratio)
    kx, k1, k2 = jax.random.split(key, 3)
    x = jax.random.normal(kx, (B, C, H, W), dtype=jnp.float32)
    b1 = 1.0 / jnp.sqrt(C)
    b2 = 1.0 / jnp.sqrt(mid)
    w1 = jax.random.uniform(k1, (mid, C), jnp.float32, minval=-b1, maxval=b1)
    w2 = jax.random.uniform(k2, (C, mid), jnp.float32, minval=-b2, maxval=b2)
    return x, w1, w2


def _check(name, key, B, C, H, W, ratio, **kw):
    x, w1, w2 = _make_inputs(key, B, C, H, W, ratio)
    out = jax.block_until_ready(channel_attention(x, w1, w2, **kw))
    ref = _reference(x, w1, w2)
    assert out.shape == (B, C, 1, 1), f"{name}: bad shape {out.shape}"
    assert jnp.allclose(out, ref, atol=1e-5, rtol=1e-5), f"{name} mismatch"


if __name__ == "__main__":
    keys = jax.random.split(jax.random.PRNGKey(0), 6)

    # Fused (single-step) paths.
    _check("fused/no-tail", keys[0], B=2, C=16, H=32, W=32, ratio=8)      # HW=1024
    _check("fused/tail", keys[1], B=2, C=8, H=18, W=18, ratio=8)          # HW=324
    _check("fused/tail-only", keys[2], B=2, C=4, H=10, W=10, ratio=8)     # HW=100

    # Tiled (multi-step) paths, forced with a small per-buffer budget.
    _check("tiled/divisible", keys[3], B=2, C=16, H=32, W=32, ratio=8,
           buffer_budget_bytes=16 * 512 * 4)    # t_hw=512, 2 steps, no tail
    _check("tiled/full+tail", keys[4], B=2, C=8, H=20, W=20, ratio=8,
           buffer_budget_bytes=8 * 256 * 4)     # t_hw=256, last tile 144 valid
    _check("tiled/tail-only-last", keys[5], B=2, C=8, H=20, W=20, ratio=8,
           buffer_budget_bytes=8 * 128 * 4)     # t_hw=128, last tile 16 valid

    print("KERNEL_OK")
</pallas_src>

<mosaic_0001>
module attributes {stable_mosaic.version = 11 : i64} {
  func.func @_ca_kernel_fused(%arg0: i32, %arg1: memref<2x16x1024xf32, #tpu.memory_space<vmem>>, %arg2: memref<2x16xf32, #tpu.memory_space<vmem>>, %arg3: memref<16x2xf32, #tpu.memory_space<vmem>>, %arg4: memref<2x1x16xf32, #tpu.memory_space<vmem>>) attributes {dimension_semantics = [#tpu.dimension_semantics<parallel>], iteration_bounds = array<i64: 1>, scalar_prefetch = 0 : i64, scratch_operands = 0 : i64, tpu.core_type = #tpu.core_type<tc>, window_params = [{transform_indices = @transform_0, window_bounds = array<i64: 2, 16, 1024>}, {pipeline_mode = #tpu.pipeline_mode<synchronous>, transform_indices = @transform_1, window_bounds = array<i64: 2, 16>}, {pipeline_mode = #tpu.pipeline_mode<synchronous>, transform_indices = @transform_2, window_bounds = array<i64: 16, 2>}, {transform_indices = @transform_3, window_bounds = array<i64: 2, 1, 16>}]} {
    %c0 = arith.constant 0 : index
    %c0_0 = arith.constant 0 : index
    %c0_1 = arith.constant 0 : index
    %0 = vector.load %arg1[%c0, %c0_0, %c0_1] : memref<2x16x1024xf32, #tpu.memory_space<vmem>>, vector<2x16x128xf32>
    %c0_2 = arith.constant 0 : index
    %c0_3 = arith.constant 0 : index
    %c128 = arith.constant 128 : index
    %1 = vector.load %arg1[%c0_2, %c0_3, %c128] : memref<2x16x1024xf32, #tpu.memory_space<vmem>>, vector<2x16x128xf32>
    %2 = arith.addf %0, %1 : vector<2x16x128xf32>
    %3 = arith.maximumf %0, %1 : vector<2x16x128xf32>
    %c0_4 = arith.constant 0 : index
    %c0_5 = arith.constant 0 : index
    %c256 = arith.constant 256 : index
    %4 = vector.load %arg1[%c0_4, %c0_5, %c256] : memref<2x16x1024xf32, #tpu.memory_space<vmem>>, vector<2x16x128xf32>
    %5 = arith.addf %2, %4 : vector<2x16x128xf32>
    %6 = arith.maximumf %3, %4 : vector<2x16x128xf32>
    %c0_6 = arith.constant 0 : index
    %c0_7 = arith.constant 0 : index
    %c384 = arith.constant 384 : index
    %7 = vector.load %arg1[%c0_6, %c0_7, %c384] : memref<2x16x1024xf32, #tpu.memory_space<vmem>>, vector<2x16x128xf32>
    %8 = arith.addf %5, %7 : vector<2x16x128xf32>
    %9 = arith.maximumf %6, %7 : vector<2x16x128xf32>
    %c0_8 = arith.constant 0 : index
    %c0_9 = arith.constant 0 : index
    %c512 = arith.constant 512 : index
    %10 = vector.load %arg1[%c0_8, %c0_9, %c512] : memref<2x16x1024xf32, #tpu.memory_space<vmem>>, vector<2x16x128xf32>
    %11 = arith.addf %8, %10 : vector<2x16x128xf32>
    %12 = arith.maximumf %9, %10 : vector<2x16x128xf32>
    %c0_10 = arith.constant 0 : index
    %c0_11 = arith.constant 0 : index
    %c640 = arith.constant 640 : index
    %13 = vector.load %arg1[%c0_10, %c0_11, %c640] : memref<2x16x1024xf32, #tpu.memory_space<vmem>>, vector<2x16x128xf32>
    %14 = arith.addf %11, %13 : vector<2x16x128xf32>
    %15 = arith.maximumf %12, %13 : vector<2x16x128xf32>
    %c0_12 = arith.constant 0 : index
    %c0_13 = arith.constant 0 : index
    %c768 = arith.constant 768 : index
    %16 = vector.load %arg1[%c0_12, %c0_13, %c768] : memref<2x16x1024xf32, #tpu.memory_space<vmem>>, vector<2x16x128xf32>
    %17 = arith.addf %14, %16 : vector<2x16x128xf32>
    %18 = arith.maximumf %15, %16 : vector<2x16x128xf32>
    %c0_14 = arith.constant 0 : index
    %c0_15 = arith.constant 0 : index
    %c896 = arith.constant 896 : index
    %19 = vector.load %arg1[%c0_14, %c0_15, %c896] : memref<2x16x1024xf32, #tpu.memory_space<vmem>>, vector<2x16x128xf32>
    %20 = arith.addf %17, %19 : vector<2x16x128xf32>
    %21 = arith.maximumf %18, %19 : vector<2x16x128xf32>
    %22 = vector.extract_strided_slice %20 {offsets = [0, 0, 0], sizes = [1, 16, 128], strides = [1, 1, 1]} : vector<2x16x128xf32> to vector<1x16x128xf32>
    %23 = vector.shape_cast %22 : vector<1x16x128xf32> to vector<16x128xf32>
    %cst = arith.constant dense<0.000000e+00> : vector<16xf32>
    %24 = vector.multi_reduction <add>, %23, %cst [1] : vector<16x128xf32> to vector<16xf32>
    %25 = vector.shape_cast %24 : vector<16xf32> to vector<16x1xf32>
    %26 = vector.extract_strided_slice %21 {offsets = [0, 0, 0], sizes = [1, 16, 128], strides = [1, 1, 1]} : vector<2x16x128xf32> to vector<1x16x128xf32>
    %27 = vector.shape_cast %26 : vector<1x16x128xf32> to vector<16x128xf32>
    %cst_16 = arith.constant dense<0xFF800000> : vector<16xf32>
    %28 = vector.multi_reduction <maximumf>, %27, %cst_16 [1] : vector<16x128xf32> to vector<16xf32>
    %29 = vector.shape_cast %28 : vector<16xf32> to vector<16x1xf32>
    %cst_17 = arith.constant 9.765625E-4 : f32
    %30 = vector.broadcast %cst_17 : f32 to vector<16x1xf32>
    %31 = arith.mulf %25, %30 : vector<16x1xf32>
    %32 = tpu.concatenate %31, %29 in 1 : vector<16x1xf32>, vector<16x1xf32> -> vector<16x2xf32>
    %c0_18 = arith.constant 0 : index
    %c0_19 = arith.constant 0 : index
    %33 = vector.load %arg2[%c0_18, %c0_19] : memref<2x16xf32, #tpu.memory_space<vmem>>, vector<2x16xf32>
    %c0_20 = arith.constant 0 : index
    %c0_21 = arith.constant 0 : index
    %34 = vector.load %arg3[%c0_20, %c0_21] : memref<16x2xf32, #tpu.memory_space<vmem>>, vector<16x2xf32>
    %cst_22 = arith.constant dense<0.000000e+00> : vector<2x2xf32>
    %35 = tpu.matmul %33, %32, %cst_22 {dimension_numbers = #tpu.dot_dimension_numbers<[1], [0], [0], [1], [0, 0, 1, 1], [], []>} : vector<2x16xf32>, vector<16x2xf32>, vector<2x2xf32> -> vector<2x2xf32>
    %cst_23 = arith.constant 0.000000e+00 : f32
    %36 = vector.broadcast %cst_23 : f32 to vector<2x2xf32>
    %37 = arith.maximumf %35, %36 : vector<2x2xf32>
    %cst_24 = arith.constant dense<0.000000e+00> : vector<2x16xf32>
    %38 = tpu.matmul %37, %34, %cst_24 {dimension_numbers = #tpu.dot_dimension_numbers<[0], [1], [1], [0], [0, 1, 1, 0], [], []>} : vector<2x2xf32>, vector<16x2xf32>, vector<2x16xf32> -> vector<2x16xf32>
    %39 = vector.extract_strided_slice %38 {offsets = [0, 0], sizes = [1, 16], strides = [1, 1]} : vector<2x16xf32> to vector<1x16xf32>
    %40 = vector.extract_strided_slice %38 {offsets = [1, 0], sizes = [1, 16], strides = [1, 1]} : vector<2x16xf32> to vector<1x16xf32>
    %41 = arith.addf %39, %40 : vector<1x16xf32>
    %42 = arith.negf %41 : vector<1x16xf32>
    %43 = math.exp %42 : vector<1x16xf32>
    %cst_25 = arith.constant 1.000000e+00 : f32
    %44 = vector.broadcast %cst_25 : f32 to vector<1x16xf32>
    %45 = arith.addf %44, %43 : vector<1x16xf32>
    %46 = arith.divf %44, %45 : vector<1x16xf32>
    %c0_26 = arith.constant 0 : index
    %c0_27 = arith.constant 0 : index
    %c0_28 = arith.constant 0 : index
    %47 = vector.load %arg4[%c0_26, %c0_27, %c0_28] : memref<2x1x16xf32, #tpu.memory_space<vmem>>, vector<1x1x16xf32>
    %48 = vector.shape_cast %47 : vector<1x1x16xf32> to vector<1x16xf32>
    %49 = vector.shape_cast %46 : vector<1x16xf32> to vector<1x1x16xf32>
    tpu.vector_store %arg4[%c0_26, %c0_27, %c0_28], %49 {strides = array<i32>} : memref<2x1x16xf32, #tpu.memory_space<vmem>>, vector<1x1x16xf32>,
    %50 = vector.extract_strided_slice %20 {offsets = [1, 0, 0], sizes = [1, 16, 128], strides = [1, 1, 1]} : vector<2x16x128xf32> to vector<1x16x128xf32>
    %51 = vector.shape_cast %50 : vector<1x16x128xf32> to vector<16x128xf32>
    %cst_29 = arith.constant dense<0.000000e+00> : vector<16xf32>
    %52 = vector.multi_reduction <add>, %51, %cst_29 [1] : vector<16x128xf32> to vector<16xf32>
    %53 = vector.shape_cast %52 : vector<16xf32> to vector<16x1xf32>
    %54 = vector.extract_strided_slice %21 {offsets = [1, 0, 0], sizes = [1, 16, 128], strides = [1, 1, 1]} : vector<2x16x128xf32> to vector<1x16x128xf32>
    %55 = vector.shape_cast %54 : vector<1x16x128xf32> to vector<16x128xf32>
    %cst_30 = arith.constant dense<0xFF800000> : vector<16xf32>
    %56 = vector.multi_reduction <maximumf>, %55, %cst_30 [1] : vector<16x128xf32> to vector<16xf32>
    %57 = vector.shape_cast %56 : vector<16xf32> to vector<16x1xf32>
    %cst_31 = arith.constant 9.765625E-4 : f32
    %58 = vector.broadcast %cst_31 : f32 to vector<16x1xf32>
    %59 = arith.mulf %53, %58 : vector<16x1xf32>
    %60 = tpu.concatenate %59, %57 in 1 : vector<16x1xf32>, vector<16x1xf32> -> vector<16x2xf32>
    %c0_32 = arith.constant 0 : index
    %c0_33 = arith.constant 0 : index
    %61 = vector.load %arg2[%c0_32, %c0_33] : memref<2x16xf32, #tpu.memory_space<vmem>>, vector<2x16xf32>
    %c0_34 = arith.constant 0 : index
    %c0_35 = arith.constant 0 : index
    %62 = vector.load %arg3[%c0_34, %c0_35] : memref<16x2xf32, #tpu.memory_space<vmem>>, vector<16x2xf32>
    %cst_36 = arith.constant dense<0.000000e+00> : vector<2x2xf32>
    %63 = tpu.matmul %61, %60, %cst_36 {dimension_numbers = #tpu.dot_dimension_numbers<[1], [0], [0], [1], [0, 0, 1, 1], [], []>} : vector<2x16xf32>, vector<16x2xf32>, vector<2x2xf32> -> vector<2x2xf32>
    %cst_37 = arith.constant 0.000000e+00 : f32
    %64 = vector.broadcast %cst_37 : f32 to vector<2x2xf32>
    %65 = arith.maximumf %63, %64 : vector<2x2xf32>
    %cst_38 = arith.constant dense<0.000000e+00> : vector<2x16xf32>
    %66 = tpu.matmul %65, %62, %cst_38 {dimension_numbers = #tpu.dot_dimension_numbers<[0], [1], [1], [0], [0, 1, 1, 0], [], []>} : vector<2x2xf32>, vector<16x2xf32>, vector<2x16xf32> -> vector<2x16xf32>
    %67 = vector.extract_strided_slice %66 {offsets = [0, 0], sizes = [1, 16], strides = [1, 1]} : vector<2x16xf32> to vector<1x16xf32>
    %68 = vector.extract_strided_slice %66 {offsets = [1, 0], sizes = [1, 16], strides = [1, 1]} : vector<2x16xf32> to vector<1x16xf32>
    %69 = arith.addf %67, %68 : vector<1x16xf32>
    %70 = arith.negf %69 : vector<1x16xf32>
    %71 = math.exp %70 : vector<1x16xf32>
    %cst_39 = arith.constant 1.000000e+00 : f32
    %72 = vector.broadcast %cst_39 : f32 to vector<1x16xf32>
    %73 = arith.addf %72, %71 : vector<1x16xf32>
    %74 = arith.divf %72, %73 : vector<1x16xf32>
    %c1 = arith.constant 1 : index
    %c0_40 = arith.constant 0 : index
    %c0_41 = arith.constant 0 : index
    %75 = vector.load %arg4[%c1, %c0_40, %c0_41] : memref<2x1x16xf32, #tpu.memory_space<vmem>>, vector<1x1x16xf32>
    %76 = vector.shape_cast %75 : vector<1x1x16xf32> to vector<1x16xf32>
    %77 = vector.shape_cast %74 : vector<1x16xf32> to vector<1x1x16xf32>
    tpu.vector_store %arg4[%c1, %c0_40, %c0_41], %77 {strides = array<i32>} : memref<2x1x16xf32, #tpu.memory_space<vmem>>, vector<1x1x16xf32>,
    return
  }
  func.func @transform_0(%arg0: i32) -> (i32, i32, i32) {
    %c0_i32 = arith.constant 0 : i32
    %c0_i32_0 = arith.constant 0 : i32
    %c0_i32_1 = arith.constant 0 : i32
    return %arg0, %c0_i32, %c0_i32_0 : i32, i32, i32
  }
  func.func @transform_1(%arg0: i32) -> (i32, i32) {
    %c0_i32 = arith.constant 0 : i32
    %c0_i32_0 = arith.constant 0 : i32
    %c0_i32_1 = arith.constant 0 : i32
    return %c0_i32, %c0_i32_0 : i32, i32
  }
  func.func @transform_2(%arg0: i32) -> (i32, i32) {
    %c0_i32 = arith.constant 0 : i32
    %c0_i32_0 = arith.constant 0 : i32
    %c0_i32_1 = arith.constant 0 : i32
    return %c0_i32, %c0_i32_0 : i32, i32
  }
  func.func @transform_3(%arg0: i32) -> (i32, i32, i32) {
    %c0_i32 = arith.constant 0 : i32
    %c0_i32_0 = arith.constant 0 : i32
    %c0_i32_1 = arith.constant 0 : i32
    return %arg0, %c0_i32, %c0_i32_0 : i32, i32, i32
  }
}

</mosaic_0001>

<llo_original>
// kernel: tpu_custom_call.1
$region0: #{tpu_custom_call.1}
  #allocation0 [shape = 'u32[]', space=smem, size = 0x4, offset = 0x4, fixed_abs, tag = 'smem constant byte address 0x4 - core index']
  #allocation1 [shape = 'u32[144,128]{1,0:T(1,128)}', space=vmem, size = 0x12000, scoped, tag = 'internal scratch']
  %s0 = inlined_call_operand.hbm [shape: f32[2,16,1024], index: 0, kind: input, shape index: {}]
  %s1 = inlined_call_operand.vmem [shape: f32[2,16], index: 1, kind: input, shape index: {}]
  %s2 = inlined_call_operand.vmem [shape: f32[16,2], index: 2, kind: input, shape index: {}]
  %s3 = inlined_call_operand.hbm [shape: f32[2,1,16], index: 3, kind: output, shape index: {}]
  %s4 = sld [smem:[#allocation0]]
  $region26: #{tpu_custom_call.1} parent=0
    _
  %s6 = ssub.s32 1, %s4
  %s7 = scalar_select 0, %s6, %s4
  $region1: #{tpu_custom_call.1} parent=0
    #allocation2 [shape = 'u8[131072]{0}', space=vmem, size = 0x20000, scoped, tag = 'input window, operand 0, single buffered']
    #allocation3 [shape = 's32[1]{0}', space=sflag, size = 0x4, scoped, tag = 'scoped memory for tpu_custom_call.1']
    #allocation4 [shape = 's32[1]{0}', space=sflag, size = 0x4, scoped, tag = 'scoped memory for tpu_custom_call.1']
    #allocation5 [shape = 'u8[1024]{0}', space=vmem, size = 0x400, scoped, tag = 'output window, operand 0, single buffered']
    %8 = vsyncpa [#allocation3], 0
    %9 = vsyncpa [#allocation4], 0
    // Predicated region
    $region2: #{tpu_custom_call.1} parent=1 // pred_check
      _
    $region3: #{tpu_custom_call.1} parent=1 // pred_check_branch
      %11 = sbr.rel (0) target = $region5
    $region4: #{tpu_custom_call.1} parent=1 // pred_region
      %s13 = ssub.s32 4096, 4096
      %14 = vsyncadd [#allocation3], %s13
      %s15 = sshll.u32 [#allocation2], 4
      %s16 = int_to_ptr.vmem [resolvable:$true] %s15
      %21 = dma.hbm_to_vmem [thread:$0]  %s0, 4096, %s16, [#allocation3], 1024, 1024, 64
    $region5: #{tpu_custom_call.1} parent=1 // pred_fallthru
      _
    // Predicated region
    $region6: #{tpu_custom_call.1} parent=1 // pred_check
      _
    $region7: #{tpu_custom_call.1} parent=1 // pred_check_branch
      %23 = sbr.rel (0) target = $region9
    $region8: #{tpu_custom_call.1} parent=1 // pred_region
      _
    $region9: #{tpu_custom_call.1} parent=1 // pred_fallthru
      _
    // Predicated region
    $region10: #{tpu_custom_call.1} parent=1 // pred_check
      _
    $region11: #{tpu_custom_call.1} parent=1 // pred_check_branch
      %25 = sbr.rel (0) target = $region13
    $region12: #{tpu_custom_call.1} parent=1 // pred_region
      _
    $region13: #{tpu_custom_call.1} parent=1 // pred_fallthru
      _
    // Predicated region
    $region14: #{tpu_custom_call.1} parent=1 // pred_check
      _
    $region15: #{tpu_custom_call.1} parent=1 // pred_check_branch
      %27 = sbr.rel (0) target = $region17
    $region16: #{tpu_custom_call.1} parent=1 // pred_region
      %28 = dma.done [#allocation3], 4096
    $region17: #{tpu_custom_call.1} parent=1 // pred_fallthru
      _
    %v29 = vld [vmem:[#allocation2] sm:$0xff]
    %v30 = vld [vmem:[#allocation2 + $0x40] sm:$0xff]
    %v31 = vld [vmem:[#allocation2 + $0x80] sm:$0xff]
    %v32 = vld [vmem:[#allocation2 + $0xc0] sm:$0xff]
    %v33 = vld [vmem:[#allocation2 + $0x8] sm:$0xff]
    %v34 = vld [vmem:[#allocation2 + $0x48] sm:$0xff]
    %v35 = vld [vmem:[#allocation2 + $0x88] sm:$0xff]
    %v36 = vld [vmem:[#allocation2 + $0xc8] sm:$0xff]
    %v37 = vadd.f32 %v29, %v33
    %v38 = vadd.f32 %v30, %v34
    %v39 = vadd.f32 %v31, %v35
    %v40 = vadd.f32 %v32, %v36
    %v41 = vmax.f32 %v29, %v33
    %v42 = vmax.f32 %v30, %v34
    %v43 = vmax.f32 %v31, %v35
    %v44 = vmax.f32 %v32, %v36
    %v45 = vld [vmem:[#allocation2 + $0x10] sm:$0xff]
    %v46 = vld [vmem:[#allocation2 + $0x50] sm:$0xff]
    %v47 = vld [vmem:[#allocation2 + $0x90] sm:$0xff]
    %v48 = vld [vmem:[#allocation2 + $0xd0] sm:$0xff]
    %v49 = vadd.f32 %v37, %v45
    %v50 = vadd.f32 %v38, %v46
    %v51 = vadd.f32 %v39, %v47
    %v52 = vadd.f32 %v40, %v48
    %v53 = vmax.f32 %v41, %v45
    %v54 = vmax.f32 %v42, %v46
    %v55 = vmax.f32 %v43, %v47
    %v56 = vmax.f32 %v44, %v48
    %v57 = vld [vmem:[#allocation2 + $0x18] sm:$0xff]
    %v58 = vld [vmem:[#allocation2 + $0x58] sm:$0xff]
    %v59 = vld [vmem:[#allocation2 + $0x98] sm:$0xff]
    %v60 = vld [vmem:[#allocation2 + $0xd8] sm:$0xff]
    %v61 = vadd.f32 %v49, %v57
    %v62 = vadd.f32 %v50, %v58
    %v63 = vadd.f32 %v51, %v59
    %v64 = vadd.f32 %v52, %v60
    %v65 = vmax.f32 %v53, %v57
    %v66 = vmax.f32 %v54, %v58
    %v67 = vmax.f32 %v55, %v59
    %v68 = vmax.f32 %v56, %v60
    %v69 = vld [vmem:[#allocation2 + $0x20] sm:$0xff]
    %v70 = vld [vmem:[#allocation2 + $0x60] sm:$0xff]
    %v71 = vld [vmem:[#allocation2 + $0xa0] sm:$0xff]
    %v72 = vld [vmem:[#allocation2 + $0xe0] sm:$0xff]
    %v73 = vadd.f32 %v61, %v69
    %v74 = vadd.f32 %v62, %v70
    %v75 = vadd.f32 %v63, %v71
    %v76 = vadd.f32 %v64, %v72
    %v77 = vmax.f32 %v65, %v69
    %v78 = vmax.f32 %v66, %v70
    %v79 = vmax.f32 %v67, %v71
    %v80 = vmax.f32 %v68, %v72
    %v81 = vld [vmem:[#allocation2 + $0x28] sm:$0xff]
    %v82 = vld [vmem:[#allocation2 + $0x68] sm:$0xff]
    %v83 = vld [vmem:[#allocation2 + $0xa8] sm:$0xff]
    %v84 = vld [vmem:[#allocation2 + $0xe8] sm:$0xff]
    %v85 = vadd.f32 %v73, %v81
    %v86 = vadd.f32 %v74, %v82
    %v87 = vadd.f32 %v75, %v83
    %v88 = vadd.f32 %v76, %v84
    %v89 = vmax.f32 %v77, %v81
    %v90 = vmax.f32 %v78, %v82
    %v91 = vmax.f32 %v79, %v83
    %v92 = vmax.f32 %v80, %v84
    %v93 = vld [vmem:[#allocation2 + $0x30] sm:$0xff]
    %v94 = vld [vmem:[#allocation2 + $0x70] sm:$0xff]
    %v95 = vld [vmem:[#allocation2 + $0xb0] sm:$0xff]
    %v96 = vld [vmem:[#allocation2 + $0xf0] sm:$0xff]
    %v97 = vadd.f32 %v85, %v93
    %v98 = vadd.f32 %v86, %v94
    %v99 = vadd.f32 %v87, %v95
    %v100 = vadd.f32 %v88, %v96
    %v101 = vmax.f32 %v89, %v93
    %v102 = vmax.f32 %v90, %v94
    %v103 = vmax.f32 %v91, %v95
    %v104 = vmax.f32 %v92, %v96
    %v105 = vld [vmem:[#allocation2 + $0x38] sm:$0xff]
    %v106 = vld [vmem:[#allocation2 + $0x78] sm:$0xff]
    %v107 = vld [vmem:[#allocation2 + $0xb8] sm:$0xff]
    %v108 = vld [vmem:[#allocation2 + $0xf8] sm:$0xff]
    %v109 = vadd.f32 %v97, %v105
    %v110 = vadd.f32 %v98, %v106
    %v111 = vadd.f32 %v99, %v107
    %v112 = vadd.f32 %v100, %v108
    %v113 = vmax.f32 %v101, %v105
    %v114 = vmax.f32 %v102, %v106
    %v115 = vmax.f32 %v103, %v107
    %v116 = vmax.f32 %v104, %v108
    %117 = vadd.xlane.f32.xlu0 %v109
    %v118 = vpop.xlane.xlu0 %117
    %119 = vadd.xlane.f32.xlu0 %v110
    %v120 = vpop.xlane.xlu0 %119
    %121 = vmax.xlane.f32.xlu0 %v113
    %v122 = vpop.xlane.xlu0 %121
    %123 = vmax.xlane.f32.xlu0 %v114
    %v124 = vpop.xlane.xlu0 %123
    %v125 = vmul.f32 %v118, 0.0009765625
    %v126 = vmul.f32 %v120, 0.0009765625
    %vm127 = vcmask 7168
    %v128 = vsel %vm127, %v125, %v122
    %v129 = vsel %vm127, %v126, %v124
    %v130 = vld [vmem:[%s1] sm:$0x3]
    %v131 = vld [vmem:[%s2] sm:$0xff]
    %v132 = vld [vmem:[%s2 + $0x8] sm:$0xff]
    %vm133 = vcmask 130048
    %v135 = vsel %vm133, %v130, 0
    %137 = vmatprep.subr.mxu0 0.0
    %138 = vmatpush1.msra.mxu0 0.0
    %139 = vmatprep.subr.mxu0 0.0
    %140 = vmatpush1.msra.mxu0 0.0
    %141 = vmatprep.subr.mxu0 0.0
    %142 = vmatpush1.msra.mxu0 0.0
    %143 = vmatprep.subr.mxu0 0.0
    %144 = vmatpush1.msra.mxu0 0.0
    %145 = vmatprep.subr.mxu0 0.0
    %146 = vmatpush1.msra.mxu0 0.0
    %147 = vmatprep.subr.mxu0 0.0
    %148 = vmatpush1.msra.mxu0 0.0
    %149 = vmatprep.subr.mxu0 0.0
    %150 = vmatpush1.msra.mxu0 0.0
    %151 = vmatprep.subr.mxu0 0.0
    %152 = vmatpush1.msra.mxu0 0.0
    %153 = vmatprep.subr.mxu0 0.0
    %154 = vmatpush1.msra.mxu0 0.0
    %155 = vmatprep.subr.mxu0 0.0
    %156 = vmatpush1.msra.mxu0 0.0
    %157 = vmatprep.subr.mxu0 0.0
    %158 = vmatpush1.msra.mxu0 0.0
    %159 = vmatprep.subr.mxu0 0.0
    %160 = vmatpush1.msra.mxu0 0.0
    %161 = vmatprep.subr.mxu0 0.0
    %162 = vmatpush1.msra.mxu0 0.0
    %163 = vmatprep.subr.mxu0 0.0
    %164 = vmatpush1.msra.mxu0 0.0
    %165 = vmatprep.subr.mxu0 0.0
    %166 = vmatpush1.msra.mxu0 %v129
    %167 = vmatprep.subr.mxu0 0.0
    %168 = vmatpush1.msra.mxu0 %v128
    %169 = vmatprep.subr.mxu0 0.0
    %170 = vmatpush2.msra.mxu0 0.0
    %171 = vmatprep.subr.mxu0 0.0
    %172 = vmatpush2.msra.mxu0 0.0
    %173 = vmatprep.subr.mxu0 0.0
    %174 = vmatpush2.msra.mxu0 0.0
    %175 = vmatprep.subr.mxu0 0.0
    %176 = vmatpush2.msra.mxu0 0.0
    %177 = vmatprep.subr.mxu0 0.0
    %178 = vmatpush2.msra.mxu0 0.0
    %179 = vmatprep.subr.mxu0 0.0
    %180 = vmatpush2.msra.mxu0 0.0
    %181 = vmatprep.subr.mxu0 0.0
    %182 = vmatpush2.msra.mxu0 0.0
    %183 = vmatprep.subr.mxu0 0.0
    %184 = vmatpush2.msra.mxu0 0.0
    %185 = vmatprep.subr.mxu0 0.0
    %186 = vmatpush2.msra.mxu0 0.0
    %187 = vmatprep.subr.mxu0 0.0
    %188 = vmatpush2.msra.mxu0 0.0
    %189 = vmatprep.subr.mxu0 0.0
    %190 = vmatpush2.msra.mxu0 0.0
    %191 = vmatprep.subr.mxu0 0.0
    %192 = vmatpush2.msra.mxu0 0.0
    %193 = vmatprep.subr.mxu0 0.0
    %194 = vmatpush2.msra.mxu0 0.0
    %195 = vmatprep.subr.mxu0 0.0
    %196 = vmatpush2.msra.mxu0 0.0
    %197 = vmatprep.subr.mxu0 0.0
    %198 = vmatpush2.msra.mxu0 0.0
    %199 = vmatprep.subr.mxu0 0.0
    %200 = vmatpush2.msra.mxu0 0.0
    %201 = vmatprep.mubr.f32.mxu0 0.0
    %202 = vmatmul.mubr.f32.gmra.mxu0 %v135
    %v203 = vpop.f32.mrf.mxu0
    %v204 = vadd.f32 0.0, %v203
    %v205 = vpop.f32.mrf.mxu0
    %206 = vdwg.mxu0
    %v207 = vmax.f32 %v204, 0.0
    %208 = vxpose.xlu0.b32.start [1/16] %v207, 128
    %209 = vxpose.xlu0.b32.cont [2/16] 0.0, 128
    %210 = vxpose.xlu0.b32.cont [3/16] 0.0, 128
    %211 = vxpose.xlu0.b32.cont [4/16] 0.0, 128
    %212 = vxpose.xlu0.b32.cont [5/16] 0.0, 128
    %213 = vxpose.xlu0.b32.cont [6/16] 0.0, 128
    %214 = vxpose.xlu0.b32.cont [7/16] 0.0, 128
    %215 = vxpose.xlu0.b32.cont [8/16] 0.0, 128
    %216 = vxpose.xlu0.b32.cont [9/16] 0.0, 128
    %217 = vxpose.xlu0.b32.cont [10/16] 0.0, 128
    %218 = vxpose.xlu0.b32.cont [11/16] 0.0, 128
    %219 = vxpose.xlu0.b32.cont [12/16] 0.0, 128
    %220 = vxpose.xlu0.b32.cont [13/16] 0.0, 128
    %221 = vxpose.xlu0.b32.cont [14/16] 0.0, 128
    %222 = vxpose.xlu0.b32.cont [15/16] 0.0, 128
    %223 = vxpose.xlu0.b32.end [16/16] 0.0, 128
    %v224 = vpop.trf.xlu0
    %v225 = vpop.trf.xlu0
    %v226 = vpop.trf.xlu0
    %v227 = vpop.trf.xlu0
    %v228 = vpop.trf.xlu0
    %v229 = vpop.trf.xlu0
    %v230 = vpop.trf.xlu0
    %v231 = vpop.trf.xlu0
    %v232 = vpop.trf.xlu0
    %v233 = vpop.trf.xlu0
    %v234 = vpop.trf.xlu0
    %v235 = vpop.trf.xlu0
    %v236 = vpop.trf.xlu0
    %v237 = vpop.trf.xlu0
    %v238 = vpop.trf.xlu0
    %v239 = vpop.trf.xlu0
    %vm240 = vcmask 15360
    %v242 = vsel %vm240, %v224, 0
    %v245 = vsel %vm240, %v131, 0
    %v248 = vsel %vm240, %v132, 0
    %250 = vmatprep.subr.mxu0 0.0
    %251 = vmatpush1.xpose.msra.mxu0 0.0
    %252 = vmatprep.subr.mxu0 0.0
    %253 = vmatpush1.xpose.msra.mxu0 0.0
    %254 = vmatprep.subr.mxu0 0.0
    %255 = vmatpush1.xpose.msra.mxu0 0.0
    %256 = vmatprep.subr.mxu0 0.0
    %257 = vmatpush1.xpose.msra.mxu0 0.0
    %258 = vmatprep.subr.mxu0 0.0
    %259 = vmatpush1.xpose.msra.mxu0 0.0
    %260 = vmatprep.subr.mxu0 0.0
    %261 = vmatpush1.xpose.msra.mxu0 0.0
    %262 = vmatprep.subr.mxu0 0.0
    %263 = vmatpush1.xpose.msra.mxu0 0.0
    %264 = vmatprep.subr.mxu0 0.0
    %265 = vmatpush1.xpose.msra.mxu0 0.0
    %266 = vmatprep.subr.mxu0 0.0
    %267 = vmatpush1.xpose.msra.mxu0 0.0
    %268 = vmatprep.subr.mxu0 0.0
    %269 = vmatpush1.xpose.msra.mxu0 0.0
    %270 = vmatprep.subr.mxu0 0.0
    %271 = vmatpush1.xpose.msra.mxu0 0.0
    %272 = vmatprep.subr.mxu0 0.0
    %273 = vmatpush1.xpose.msra.mxu0 0.0
    %274 = vmatprep.subr.mxu0 0.0
    %275 = vmatpush1.xpose.msra.mxu0 0.0
    %276 = vmatprep.subr.mxu0 0.0
    %277 = vmatpush1.xpose.msra.mxu0 0.0
    %278 = vmatprep.subr.mxu0 0.0
    %279 = vmatpush1.xpose.msra.mxu0 %v248
    %280 = vmatprep.subr.mxu0 0.0
    %281 = vmatpush1.xpose.msra.mxu0 %v245
    %282 = vmatprep.subr.mxu0 0.0
    %283 = vmatpush2.xpose.msra.mxu0 0.0
    %284 = vmatprep.subr.mxu0 0.0
    %285 = vmatpush2.xpose.msra.mxu0 0.0
    %286 = vmatprep.subr.mxu0 0.0
    %287 = vmatpush2.xpose.msra.mxu0 0.0
    %288 = vmatprep.subr.mxu0 0.0
    %289 = vmatpush2.xpose.msra.mxu0 0.0
    %290 = vmatprep.subr.mxu0 0.0
    %291 = vmatpush2.xpose.msra.mxu0 0.0
    %292 = vmatprep.subr.mxu0 0.0
    %293 = vmatpush2.xpose.msra.mxu0 0.0
    %294 = vmatprep.subr.mxu0 0.0
    %295 = vmatpush2.xpose.msra.mxu0 0.0
    %296 = vmatprep.subr.mxu0 0.0
    %297 = vmatpush2.xpose.msra.mxu0 0.0
    %298 = vmatprep.subr.mxu0 0.0
    %299 = vmatpush2.xpose.msra.mxu0 0.0
    %300 = vmatprep.subr.mxu0 0.0
    %301 = vmatpush2.xpose.msra.mxu0 0.0
    %302 = vmatprep.subr.mxu0 0.0
    %303 = vmatpush2.xpose.msra.mxu0 0.0
    %304 = vmatprep.subr.mxu0 0.0
    %305 = vmatpush2.xpose.msra.mxu0 0.0
    %306 = vmatprep.subr.mxu0 0.0
    %307 = vmatpush2.xpose.msra.mxu0 0.0
    %308 = vmatprep.subr.mxu0 0.0
    %309 = vmatpush2.xpose.msra.mxu0 0.0
    %310 = vmatprep.subr.mxu0 0.0
    %311 = vmatpush2.xpose.msra.mxu0 0.0
    %312 = vmatprep.subr.mxu0 0.0
    %313 = vmatpush2.xpose.msra.mxu0 0.0
    %314 = vmatprep.mubr.f32.mxu0 0.0
    %315 = vmatmul.mubr.f32.gmra.mxu0 %v242
    %v316 = vpop.f32.mrf.mxu0
    %v317 = vadd.f32 0.0, %v316
    %v318 = vpop.f32.mrf.mxu0
    %319 = vdwg.mxu0
    %v321 = vrot.slane %v317, 1
    %v323 = vadd.f32 %v317, %v321
    %v324 = vxor.u32 %v323, 2147483648
    %v325 = vmul.f32 %v324, 1.442695
    %v326 = vpow.pop %v325
    %v327 = vadd.f32 %v326, 1.0
    %v328 = vrcp.pop %v327
    %v329 = vmul.f32 1.0, %v328
    %vm330 = vcmask 122880
    %331 = vst.msk [vmem:[#allocation5] sm:$0x1] %vm330, %v329
    %332 = vadd.xlane.f32.xlu0 %v111
    %v333 = vpop.xlane.xlu0 %332
    %334 = vadd.xlane.f32.xlu0 %v112
    %v335 = vpop.xlane.xlu0 %334
    %336 = vmax.xlane.f32.xlu0 %v115
    %v337 = vpop.xlane.xlu0 %336
    %338 = vmax.xlane.f32.xlu0 %v116
    %v339 = vpop.xlane.xlu0 %338
    %v340 = vmul.f32 %v333, 0.0009765625
    %v341 = vmul.f32 %v335, 0.0009765625
    %v342 = vsel %vm127, %v340, %v337
    %v343 = vsel %vm127, %v341, %v339
    %v344 = vld [vmem:[%s1] sm:$0x3]
    %v345 = vld [vmem:[%s2] sm:$0xff]
    %v346 = vld [vmem:[%s2 + $0x8] sm:$0xff]
    %v348 = vsel %vm133, %v344, 0
    %350 = vmatprep.subr.mxu0 0.0
    %351 = vmatpush1.msra.mxu0 0.0
    %352 = vmatprep.subr.mxu0 0.0
    %353 = vmatpush1.msra.mxu0 0.0
    %354 = vmatprep.subr.mxu0 0.0
    %355 = vmatpush1.msra.mxu0 0.0
    %356 = vmatprep.subr.mxu0 0.0
    %357 = vmatpush1.msra.mxu0 0.0
    %358 = vmatprep.subr.mxu0 0.0
    %359 = vmatpush1.msra.mxu0 0.0
    %360 = vmatprep.subr.mxu0 0.0
    %361 = vmatpush1.msra.mxu0 0.0
    %362 = vmatprep.subr.mxu0 0.0
    %363 = vmatpush1.msra.mxu0 0.0
    %364 = vmatprep.subr.mxu0 0.0
    %365 = vmatpush1.msra.mxu0 0.0
    %366 = vmatprep.subr.mxu0 0.0
    %367 = vmatpush1.msra.mxu0 0.0
    %368 = vmatprep.subr.mxu0 0.0
    %369 = vmatpush1.msra.mxu0 0.0
    %370 = vmatprep.subr.mxu0 0.0
    %371 = vmatpush1.msra.mxu0 0.0
    %372 = vmatprep.subr.mxu0 0.0
    %373 = vmatpush1.msra.mxu0 0.0
    %374 = vmatprep.subr.mxu0 0.0
    %375 = vmatpush1.msra.mxu0 0.0
    %376 = vmatprep.subr.mxu0 0.0
    %377 = vmatpush1.msra.mxu0 0.0
    %378 = vmatprep.subr.mxu0 0.0
    %379 = vmatpush1.msra.mxu0 %v343
    %380 = vmatprep.subr.mxu0 0.0
    %381 = vmatpush1.msra.mxu0 %v342
    %382 = vmatprep.subr.mxu0 0.0
    %383 = vmatpush2.msra.mxu0 0.0
    %384 = vmatprep.subr.mxu0 0.0
    %385 = vmatpush2.msra.mxu0 0.0
    %386 = vmatprep.subr.mxu0 0.0
    %387 = vmatpush2.msra.mxu0 0.0
    %388 = vmatprep.subr.mxu0 0.0
    %389 = vmatpush2.msra.mxu0 0.0
    %390 = vmatprep.subr.mxu0 0.0
    %391 = vmatpush2.msra.mxu0 0.0
    %392 = vmatprep.subr.mxu0 0.0
    %393 = vmatpush2.msra.mxu0 0.0
    %394 = vmatprep.subr.mxu0 0.0
    %395 = vmatpush2.msra.mxu0 0.0
    %396 = vmatprep.subr.mxu0 0.0
    %397 = vmatpush2.msra.mxu0 0.0
    %398 = vmatprep.subr.mxu0 0.0
    %399 = vmatpush2.msra.mxu0 0.0
    %400 = vmatprep.subr.mxu0 0.0
    %401 = vmatpush2.msra.mxu0 0.0
    %402 = vmatprep.subr.mxu0 0.0
    %403 = vmatpush2.msra.mxu0 0.0
    %404 = vmatprep.subr.mxu0 0.0
    %405 = vmatpush2.msra.mxu0 0.0
    %406 = vmatprep.subr.mxu0 0.0
    %407 = vmatpush2.msra.mxu0 0.0
    %408 = vmatprep.subr.mxu0 0.0
    %409 = vmatpush2.msra.mxu0 0.0
    %410 = vmatprep.subr.mxu0 0.0
    %411 = vmatpush2.msra.mxu0 0.0
    %412 = vmatprep.subr.mxu0 0.0
    %413 = vmatpush2.msra.mxu0 0.0
    %414 = vmatprep.mubr.f32.mxu0 0.0
    %415 = vmatmul.mubr.f32.gmra.mxu0 %v348
    %v416 = vpop.f32.mrf.mxu0
    %v417 = vadd.f32 0.0, %v416
    %v418 = vpop.f32.mrf.mxu0
    %419 = vdwg.mxu0
    %v420 = vmax.f32 %v417, 0.0
    %421 = vxpose.xlu0.b32.start [1/16] %v420, 128
    %422 = vxpose.xlu0.b32.cont [2/16] 0.0, 128
    %423 = vxpose.xlu0.b32.cont [3/16] 0.0, 128
    %424 = vxpose.xlu0.b32.cont [4/16] 0.0, 128
    %425 = vxpose.xlu0.b32.cont [5/16] 0.0, 128
    %426 = vxpose.xlu0.b32.cont [6/16] 0.0, 128
    %427 = vxpose.xlu0.b32.cont [7/16] 0.0, 128
    %428 = vxpose.xlu0.b32.cont [8/16] 0.0, 128
    %429 = vxpose.xlu0.b32.cont [9/16] 0.0, 128
    %430 = vxpose.xlu0.b32.cont [10/16] 0.0, 128
    %431 = vxpose.xlu0.b32.cont [11/16] 0.0, 128
    %432 = vxpose.xlu0.b32.cont [12/16] 0.0, 128
    %433 = vxpose.xlu0.b32.cont [13/16] 0.0, 128
    %434 = vxpose.xlu0.b32.cont [14/16] 0.0, 128
    %435 = vxpose.xlu0.b32.cont [15/16] 0.0, 128
    %436 = vxpose.xlu0.b32.end [16/16] 0.0, 128
    %v437 = vpop.trf.xlu0
    %v438 = vpop.trf.xlu0
    %v439 = vpop.trf.xlu0
    %v440 = vpop.trf.xlu0
    %v441 = vpop.trf.xlu0
    %v442 = vpop.trf.xlu0
    %v443 = vpop.trf.xlu0
    %v444 = vpop.trf.xlu0
    %v445 = vpop.trf.xlu0
    %v446 = vpop.trf.xlu0
    %v447 = vpop.trf.xlu0
    %v448 = vpop.trf.xlu0
    %v449 = vpop.trf.xlu0
    %v450 = vpop.trf.xlu0
    %v451 = vpop.trf.xlu0
    %v452 = vpop.trf.xlu0
    %v454 = vsel %vm240, %v437, 0
    %v457 = vsel %vm240, %v345, 0
    %v460 = vsel %vm240, %v346, 0
    %462 = vmatprep.subr.mxu0 0.0
    %463 = vmatpush1.xpose.msra.mxu0 0.0
    %464 = vmatprep.subr.mxu0 0.0
    %465 = vmatpush1.xpose.msra.mxu0 0.0
    %466 = vmatprep.subr.mxu0 0.0
    %467 = vmatpush1.xpose.msra.mxu0 0.0
    %468 = vmatprep.subr.mxu0 0.0
    %469 = vmatpush1.xpose.msra.mxu0 0.0
    %470 = vmatprep.subr.mxu0 0.0
    %471 = vmatpush1.xpose.msra.mxu0 0.0
    %472 = vmatprep.subr.mxu0 0.0
    %473 = vmatpush1.xpose.msra.mxu0 0.0
    %474 = vmatprep.subr.mxu0 0.0
    %475 = vmatpush1.xpose.msra.mxu0 0.0
    %476 = vmatprep.subr.mxu0 0.0
    %477 = vmatpush1.xpose.msra.mxu0 0.0
    %478 = vmatprep.subr.mxu0 0.0
    %479 = vmatpush1.xpose.msra.mxu0 0.0
    %480 = vmatprep.subr.mxu0 0.0
    %481 = vmatpush1.xpose.msra.mxu0 0.0
    %482 = vmatprep.subr.mxu0 0.0
    %483 = vmatpush1.xpose.msra.mxu0 0.0
    %484 = vmatprep.subr.mxu0 0.0
    %485 = vmatpush1.xpose.msra.mxu0 0.0
    %486 = vmatprep.subr.mxu0 0.0
    %487 = vmatpush1.xpose.msra.mxu0 0.0
    %488 = vmatprep.subr.mxu0 0.0
    %489 = vmatpush1.xpose.msra.mxu0 0.0
    %490 = vmatprep.subr.mxu0 0.0
    %491 = vmatpush1.xpose.msra.mxu0 %v460
    %492 = vmatprep.subr.mxu0 0.0
    %493 = vmatpush1.xpose.msra.mxu0 %v457
    %494 = vmatprep.subr.mxu0 0.0
    %495 = vmatpush2.xpose.msra.mxu0 0.0
    %496 = vmatprep.subr.mxu0 0.0
    %497 = vmatpush2.xpose.msra.mxu0 0.0
    %498 = vmatprep.subr.mxu0 0.0
    %499 = vmatpush2.xpose.msra.mxu0 0.0
    %500 = vmatprep.subr.mxu0 0.0
    %501 = vmatpush2.xpose.msra.mxu0 0.0
    %502 = vmatprep.subr.mxu0 0.0
    %503 = vmatpush2.xpose.msra.mxu0 0.0
    %504 = vmatprep.subr.mxu0 0.0
    %505 = vmatpush2.xpose.msra.mxu0 0.0
    %506 = vmatprep.subr.mxu0 0.0
    %507 = vmatpush2.xpose.msra.mxu0 0.0
    %508 = vmatprep.subr.mxu0 0.0
    %509 = vmatpush2.xpose.msra.mxu0 0.0
    %510 = vmatprep.subr.mxu0 0.0
    %511 = vmatpush2.xpose.msra.mxu0 0.0
    %512 = vmatprep.subr.mxu0 0.0
    %513 = vmatpush2.xpose.msra.mxu0 0.0
    %514 = vmatprep.subr.mxu0 0.0
    %515 = vmatpush2.xpose.msra.mxu0 0.0
    %516 = vmatprep.subr.mxu0 0.0
    %517 = vmatpush2.xpose.msra.mxu0 0.0
    %518 = vmatprep.subr.mxu0 0.0
    %519 = vmatpush2.xpose.msra.mxu0 0.0
    %520 = vmatprep.subr.mxu0 0.0
    %521 = vmatpush2.xpose.msra.mxu0 0.0
    %522 = vmatprep.subr.mxu0 0.0
    %523 = vmatpush2.xpose.msra.mxu0 0.0
    %524 = vmatprep.subr.mxu0 0.0
    %525 = vmatpush2.xpose.msra.mxu0 0.0
    %526 = vmatprep.mubr.f32.mxu0 0.0
    %527 = vmatmul.mubr.f32.gmra.mxu0 %v454
    %v528 = vpop.f32.mrf.mxu0
    %v529 = vadd.f32 0.0, %v528
    %v530 = vpop.f32.mrf.mxu0
    %531 = vdwg.mxu0
    %v533 = vrot.slane %v529, 1
    %v535 = vadd.f32 %v529, %v533
    %v536 = vxor.u32 %v535, 2147483648
    %v537 = vmul.f32 %v536, 1.442695
    %v538 = vpow.pop %v537
    %v539 = vadd.f32 %v538, 1.0
    %v540 = vrcp.pop %v539
    %v541 = vmul.f32 1.0, %v540
    %s542 = scalar_lea.vmem [#allocation5], 1
    %543 = vst.msk [vmem:[%s542] sm:$0x1] %vm330, %v541
    // Predicated region
    $region18: #{tpu_custom_call.1} parent=1 // pred_check
      _
    $region19: #{tpu_custom_call.1} parent=1 // pred_check_branch
      %545 = sbr.rel (0) target = $region21
    $region20: #{tpu_custom_call.1} parent=1 // pred_region
      %s547 = ssub.s32 32, 32
      %548 = vsyncadd [#allocation4], %s547
      %s549 = sshll.u32 [#allocation5], 4
      %s550 = int_to_ptr.vmem [resolvable:$true] %s549
      %555 = dma.vmem_to_hbm [thread:$0]  %s550, 32, %s3, [#allocation4], 16, 16, 1
    $region21: #{tpu_custom_call.1} parent=1 // pred_fallthru
      _
    // Predicated region
    $region22: #{tpu_custom_call.1} parent=1 // pred_check
      _
    $region23: #{tpu_custom_call.1} parent=1 // pred_check_branch
      %557 = sbr.rel (0) target = $region25
    $region24: #{tpu_custom_call.1} parent=1 // pred_region
      %558 = dma.done [#allocation4], 32
    $region25: #{tpu_custom_call.1} parent=1 // pred_fallthru
      _
    %559 = vsyncpa [#allocation3], 1
    %560 = vsyncpa [#allocation4], 1

</llo_original>
